<compile_context>
chip_gen: v5e
topology: v5e:2x2
jax: 0.10.0
libtpu: 0.0.40
codegen_flags: <defaults>
</compile_context>

<pallas_src>
import math

import jax
import jax.numpy as jnp
from jax.experimental import pallas as pl
from jax.experimental.pallas import tpu as pltpu


def _round_up(x, m):
    return (x + m - 1) // m * m


# ----------------------------------------------------------------------------
# K-tiled GEMM (+ bias, optional fused residual) on the MXU, bf16 operands
# ----------------------------------------------------------------------------

def _gemm_tile_caps():
    """Per-generation tile caps and VMEM budget.

    v5e/v6e (128 MiB VMEM): 512/512/1024 tiles, 64 MiB scoped limit.
    v7x (64 MiB VMEM): keep 256/256/512 and a 32 MiB limit (2 inputs x 2
    buffers x tile + acc + out must stay well under 64 MiB).
    """
    vmem = 64 * 1024 * 1024
    try:
        vmem = int(pltpu.get_tpu_info().vmem_capacity_bytes)
    except Exception:
        pass  # conservative (v7x-safe) defaults
    if vmem >= 96 * 1024 * 1024:
        return 512, 512, 1024, 64 * 1024 * 1024
    return 256, 256, 512, 32 * 1024 * 1024


def _mm_bias_kernel(a_ref, b_ref, bias_ref, o_ref, acc_ref):
    @pl.when(pl.program_id(2) == 0)
    def _():
        acc_ref[...] = jnp.zeros_like(acc_ref)

    acc_ref[...] += jnp.dot(a_ref[...], b_ref[...],
                            preferred_element_type=jnp.float32)

    @pl.when(pl.program_id(2) == pl.num_programs(2) - 1)
    def _():
        o_ref[...] = acc_ref[...] + bias_ref[...]


def _mm_bias_res_kernel(a_ref, b_ref, bias_ref, res_ref, o_ref, acc_ref):
    @pl.when(pl.program_id(2) == 0)
    def _():
        acc_ref[...] = jnp.zeros_like(acc_ref)

    acc_ref[...] += jnp.dot(a_ref[...], b_ref[...],
                            preferred_element_type=jnp.float32)

    @pl.when(pl.program_id(2) == pl.num_programs(2) - 1)
    def _():
        o_ref[...] = acc_ref[...] + bias_ref[...] + res_ref[...]


def matmul_bias(a, b, bias, residual=None, mxu_dtype=jnp.bfloat16):
    """(A @ B + bias [+ residual]) as a K-tiled, lane-dense Pallas GEMM.

    A:(M,K) B:(K,N) bias:(N,) residual:(M,N) optional.  Operands are cast to
    mxu_dtype (bf16 default: MXU-native on all generations); accumulation and
    the bias/residual epilogue stay in f32 (v5e's VPU has no bf16).
    """
    M, K = a.shape
    K2, N = b.shape
    assert K == K2
    cm, cn, ck, vmem_limit = _gemm_tile_caps()
    tm = cm if M >= cm else _round_up(M, 8)
    # guarantee >=2 parallel M steps when M allows it (megacore / 2 TCs)
    if M >= 16 and _round_up(M, tm) // tm < 2:
        tm = _round_up((M + 1) // 2, 8)
    tn = cn if N >= cn else _round_up(N, 128)
    tk = ck if K >= ck else _round_up(K, 128)
    Mp, Np, Kp = _round_up(M, tm), _round_up(N, tn), _round_up(K, tk)

    a_p = jnp.pad(a.astype(mxu_dtype), ((0, Mp - M), (0, Kp - K)))
    b_p = jnp.pad(b.astype(mxu_dtype), ((0, Kp - K), (0, Np - N)))
    bias_p = jnp.pad(bias.reshape(1, N).astype(jnp.float32),
                     ((0, 0), (0, Np - N)))

    in_specs = [
        pl.BlockSpec((tm, tk), lambda i, j, k: (i, k)),
        pl.BlockSpec((tk, tn), lambda i, j, k: (k, j)),
        pl.BlockSpec((1, tn), lambda i, j, k: (0, j)),
    ]
    args = [a_p, b_p, bias_p]
    kernel = _mm_bias_kernel
    if residual is not None:
        res_p = jnp.pad(residual.astype(jnp.float32),
                        ((0, Mp - M), (0, Np - N)))
        in_specs.append(pl.BlockSpec((tm, tn), lambda i, j, k: (i, j)))
        args.append(res_p)
        kernel = _mm_bias_res_kernel

    out = pl.pallas_call(
        kernel,
        out_shape=jax.ShapeDtypeStruct((Mp, Np), jnp.float32),
        grid=(Mp // tm, Np // tn, Kp // tk),
        in_specs=in_specs,
        out_specs=pl.BlockSpec((tm, tn), lambda i, j, k: (i, j)),
        scratch_shapes=[pltpu.VMEM((tm, tn), jnp.float32)],
        compiler_params=pltpu.CompilerParams(
            dimension_semantics=("parallel", "parallel", "arbitrary"),
            vmem_limit_bytes=vmem_limit,
        ),
    )(*args)
    return out[:M, :N]


# ----------------------------------------------------------------------------
# Multi-head attention core, lane-dense (B, HW-tile, 3C) -> (B, HW-tile, C)
# ----------------------------------------------------------------------------

def _make_attn_kernel(num_heads, head_dim, channels):
    """qkv_ref: (L, nt, 3C) where L = model batch (the seq axis of the
    batch_first=False attention) and nt is a tile of the HW attention-batch.
    The 1/sqrt(hd) scale is already folded into the q columns of the fused
    projection weight.  The hd-contraction runs on the VPU (mul + lane
    reduce): the MXU is starved at these (L x hd x L) shapes, so layout/DMA is
    where the effort goes (per review)."""
    def kernel(qkv_ref, o_ref):
        L = qkv_ref.shape[0]          # small: the model batch size
        outs = []
        for h in range(num_heads):    # static unroll over heads
            c0 = h * head_dim
            qh = qkv_ref[:, :, c0:c0 + head_dim]                       # (L, nt, hd)
            kh = qkv_ref[:, :, channels + c0:channels + c0 + head_dim]
            vh = qkv_ref[:, :, 2 * channels + c0:2 * channels + c0 + head_dim]

            # scores, one key position at a time (L is tiny; static unroll).
            # TODO(synk): for large L switch to a blocked online-softmax.
            s_cols = [jnp.sum(qh * kh[j][None], axis=-1) for j in range(L)]  # (L, nt)
            m = s_cols[0]
            for j in range(1, L):
                m = jnp.maximum(m, s_cols[j])
            p_cols = [jnp.exp(c - m) for c in s_cols]
            den = p_cols[0]
            for j in range(1, L):
                den = den + p_cols[j]
            inv = pl.reciprocal(den, approx=True)                      # EUP

            acc = p_cols[0][:, :, None] * vh[0][None]                  # (L, nt, hd)
            for j in range(1, L):
                acc = acc + p_cols[j][:, :, None] * vh[j][None]
            outs.append(acc * inv[:, :, None])
        # single lane-dense store, last dim = C (all heads fused)
        o_ref[...] = jnp.concatenate(outs, axis=-1)
    return kernel


def _attn_batch_tile(HW, L):
    # Cap the HW tile so the per-head unrolled score/prob columns
    # (~2*L*L*nt f32) stay well inside the 256 KiB vreg file, while keeping
    # >=2 grid steps (pipelining + megacore) whenever HW allows it.
    cap = max(8, min(128, (16 * 1024) // max(1, L * L)))
    half = max(8, _round_up(HW, 16) // 2)
    nt = min(cap, half)
    return max(8, (nt // 8) * 8)


def mha_attention(qkv, num_heads):
    """qkv: (B, HW, 3C) f32, laid out exactly as produced by the fused
    projection GEMM.  Returns (B, HW, C) in the row order the out-projection
    consumes (no wrapper slices/transposes)."""
    B, HW, C3 = qkv.shape
    C = C3 // 3
    hd = C // num_heads
    nt = _attn_batch_tile(HW, B)
    HWp = _round_up(HW, nt)
    if HWp != HW:
        # zero rows: softmax stays finite (uniform), result is sliced away
        qkv = jnp.pad(qkv, ((0, 0), (0, HWp - HW), (0, 0)))

    out = pl.pallas_call(
        _make_attn_kernel(num_heads, hd, C),
        out_shape=jax.ShapeDtypeStruct((B, HWp, C), jnp.float32),
        grid=(HWp // nt,),
        in_specs=[pl.BlockSpec((B, nt, 3 * C), lambda i: (0, i, 0))],
        out_specs=pl.BlockSpec((B, nt, C), lambda i: (0, i, 0)),
        compiler_params=pltpu.CompilerParams(
            dimension_semantics=("parallel",)),
    )(qkv)
    return out[:, :HW, :] if HWp != HW else out


# ----------------------------------------------------------------------------
# Fused GroupNorm + 1x1 conv + residual (several batch elements per grid step)
# ----------------------------------------------------------------------------

def _make_gn_conv1x1_kernel(G, Cg, eps):
    def kernel(x_ref, gamma_ref, beta_ref, w1_ref, b1_ref, o_ref):
        bb = x_ref.shape[0]
        gamma = gamma_ref[...]
        beta = beta_ref[...]
        w1 = w1_ref[...]
        b1 = b1_ref[...]
        for b_i in range(bb):                       # static unroll over batch
            x = x_ref[b_i]                          # (C, HW)
            C, HW = x.shape
            inv_n = 1.0 / float(Cg * HW)
            xg = x.reshape(G, Cg, HW)
            # two-pass (mean-subtracted) statistics on the VPU; MXU stays free
            # for the 1x1 conv below.
            mean = jnp.sum(jnp.sum(xg, axis=2, keepdims=True),
                           axis=1, keepdims=True) * inv_n       # (G,1,1)
            xc = xg - mean
            var = jnp.sum(jnp.sum(xc * xc, axis=2, keepdims=True),
                          axis=1, keepdims=True) * inv_n
            inv = jax.lax.rsqrt(var + eps)
            gn = (xc * inv).reshape(C, HW) * gamma + beta        # (C, HW)
            o_ref[b_i] = (jnp.dot(w1, gn, preferred_element_type=jnp.float32)
                          + b1 + x)                 # conv1x1 + bias + residual
    return kernel


def groupnorm_conv1x1_residual(atn, gamma, beta, w1, b1, G):
    """atn: (B, C, HW) f32. Returns GroupNorm(G) -> 1x1 conv -> + atn."""
    B, C, HW = atn.shape
    Cg = C // G
    bb = 1
    for cand in (8, 4, 2):          # several batch elems / step, >=2 grid steps
        if B % cand == 0 and B // cand >= 2:
            bb = cand
            break
    return pl.pallas_call(
        _make_gn_conv1x1_kernel(G, Cg, 1e-5),
        out_shape=jax.ShapeDtypeStruct((B, C, HW), jnp.float32),
        grid=(B // bb,),
        in_specs=[
            pl.BlockSpec((bb, C, HW), lambda b: (b, 0, 0)),
            pl.BlockSpec((C, 1), lambda b: (0, 0)),
            pl.BlockSpec((C, 1), lambda b: (0, 0)),
            pl.BlockSpec((C, C), lambda b: (0, 0)),
            pl.BlockSpec((C, 1), lambda b: (0, 0)),
        ],
        out_specs=pl.BlockSpec((bb, C, HW), lambda b: (b, 0, 0)),
        compiler_params=pltpu.CompilerParams(
            dimension_semantics=("parallel",)),
    )(atn.astype(jnp.float32),
      gamma.reshape(C, 1).astype(jnp.float32),
      beta.reshape(C, 1).astype(jnp.float32),
      w1.astype(jnp.float32),
      b1.reshape(C, 1).astype(jnp.float32))


# ----------------------------------------------------------------------------
# Forward pass (glue in JAX, heavy compute in the Pallas kernels above)
# ----------------------------------------------------------------------------

def _block_diag3(a, b, c):
    C = a.shape[0]
    z = jnp.zeros((C, C), a.dtype)
    return jnp.concatenate([
        jnp.concatenate([a, z, z], axis=1),
        jnp.concatenate([z, b, z], axis=1),
        jnp.concatenate([z, z, c], axis=1)], axis=0)


def self_attention_block(x, params, num_heads=4):
    B, C, H, W = x.shape
    hd = C // num_heads
    G = C // 8
    HW = H * W
    scale = 1.0 / math.sqrt(hd)

    # ---- one-time weight fold: Conv2d(3x3) -> MHA in-projection -> q-scale ----
    Wc_r = params["Wc"].reshape(3 * C, C * 9)          # (3C, C*9), (ci,kh,kw) cols
    Win = _block_diag3(params["Wq"].T * scale, params["Wk"].T, params["Wv"].T)
    bin_ = jnp.concatenate(
        [params["bq"] * scale, params["bk"], params["bv"]])
    W_fused = Wc_r.T @ Win                              # (C*9, 3C)   tiny fold
    b_fused = params["bc"] @ Win + bin_                 # (3C,)

    # ---- fused 3x3-conv + in-projection as ONE bf16 K-tiled Pallas GEMM ----
    # TODO(synk): at production spatial sizes, stream the 3x3 taps via
    #   shifted-window DMA instead of materializing the 9x im2col activation.
    xp = jnp.pad(x, ((0, 0), (0, 0), (1, 1), (1, 1)))
    patches = jnp.stack(
        [xp[:, :, kh:kh + H, kw:kw + W] for kh in range(3) for kw in range(3)],
        axis=-1)                                        # (B, C, H, W, 9)
    patches = patches.transpose(0, 2, 3, 1, 4).reshape(B * HW, C * 9)
    qkv2 = matmul_bias(patches, W_fused, b_fused)       # (B*HW, 3C) = [q|k|v]
    qkv2 = qkv2.reshape(B, HW, 3 * C)                   # 'b c h w -> b (h w) c' rows

    # ---- attention (batch_first=False quirk: seq L = B, batch = HW*heads) ----
    # reads lane-dense (B, nt, 3C) blocks straight from qkv2, writes (B, HW, C)
    oh = mha_attention(qkv2, num_heads)                 # (B, HW, C)
    attn = oh.reshape(B * HW, C)                        # free view, (b, hw) rows

    # ---- out-projection with the raw-reshape residual fused in ----
    # attn_out.reshape(B, C, H, W) + x  ==  (attn_out_flat + x_flat) viewed
    # NCHW, so the residual is x raw-reshaped to (B*HW, C).
    atn_flat = matmul_bias(attn, params["Wo"].T, params["bo"],
                           residual=x.reshape(B * HW, C))   # (B*HW, C)
    atn = atn_flat.reshape(B, C, HW)                    # NCHW atn, spatial flat

    # ---- self.out: GroupNorm(C//8, C) -> Conv2d(C, C, 1), + atn (fused) ----
    out = groupnorm_conv1x1_residual(atn, params["gamma"], params["beta"],
                                     params["W1"].reshape(C, C),
                                     params["b1"], G)
    return out.reshape(B, C, H, W)


# ----------------------------------------------------------------------------
# Pure-JAX f32 reference (numerical self-check of the module semantics)
# ----------------------------------------------------------------------------

def reference(x, params, num_heads=4):
    B, C, H, W = x.shape
    hd = C // num_heads
    G = C // 8
    y = jax.lax.conv_general_dilated(
        x, params["Wc"], (1, 1), "SAME",
        dimension_numbers=("NCHW", "OIHW", "NCHW")) + params["bc"][None, :, None, None]
    qkv = y.transpose(0, 2, 3, 1).reshape(B, H * W, 3 * C)
    q, k, v = jnp.split(qkv, 3, axis=-1)
    q2 = q @ params["Wq"].T + params["bq"]
    k2 = k @ params["Wk"].T + params["bk"]
    v2 = v @ params["Wv"].T + params["bv"]

    def heads(t):
        return t.reshape(B, H * W, num_heads, hd)

    qh, kh, vh = heads(q2), heads(k2), heads(v2)
    s = jnp.einsum("inhd,jnhd->nhij", qh, kh) / math.sqrt(hd)
    p = jax.nn.softmax(s, axis=-1)
    oh = jnp.einsum("nhij,jnhd->inhd", p, vh).reshape(B, H * W, C)
    attn_out = oh @ params["Wo"].T + params["bo"]
    atn = attn_out.reshape(B, C, H, W) + x

    xr = atn.reshape(B, G, (C // G) * H * W)
    mean = xr.mean(-1, keepdims=True)
    var = xr.var(-1, keepdims=True)
    xn = ((xr - mean) / jnp.sqrt(var + 1e-5)).reshape(B, C, H, W)
    gn = xn * params["gamma"][None, :, None, None] + params["beta"][None, :, None, None]
    o = jnp.einsum("oc,bchw->bohw", params["W1"].reshape(C, C), gn) + params["b1"][None, :, None, None]
    return o + atn


# ----------------------------------------------------------------------------
# main
# ----------------------------------------------------------------------------

if __name__ == "__main__":
    # channels divisible by 8 (groups) and 4 (heads); batch (= attention seq
    # length) and head_dim > 1 so the attention math is non-degenerate.
    B, C, H, W = 8, 32, 8, 8

    key = jax.random.PRNGKey(0)
    ks = jax.random.split(key, 16)

    def rnd(k, shape, s=0.1):
        return s * jax.random.normal(k, shape, dtype=jnp.float32)

    params = {
        # to_attn Conv2d(C, 3C, k=3, pad=1)
        "Wc": rnd(ks[0], (3 * C, C, 3, 3)),
        "bc": rnd(ks[1], (3 * C,)),
        # MultiheadAttention in_proj (split) + out_proj
        "Wq": rnd(ks[2], (C, C)), "bq": rnd(ks[3], (C,)),
        "Wk": rnd(ks[4], (C, C)), "bk": rnd(ks[5], (C,)),
        "Wv": rnd(ks[6], (C, C)), "bv": rnd(ks[7], (C,)),
        # out: GroupNorm affine + Conv2d(C, C, k=1)
        "gamma": 1.0 + rnd(ks[10], (C,)),
        "beta": rnd(ks[11], (C,)),
        "W1": rnd(ks[12], (C, C, 1, 1)),
        "b1": rnd(ks[13], (C,)),
        "Wo": rnd(ks[8], (C, C)), "bo": rnd(ks[9], (C,)),
    }

    x = jax.random.normal(ks[14], (B, C, H, W), dtype=jnp.float32)

    out = self_attention_block(x, params)
    out = jax.block_until_ready(out)

    ref = reference(x, params)
    err = float(jnp.max(jnp.abs(out - ref)))
    assert out.shape == (B, C, H, W), out.shape
    # Tolerance re-validated for the bf16 MXU operands (per review): bf16
    # quantization through two GEMMs + softmax + the approx (EUP) reciprocal
    # gives a few-percent worst-case deviation on O(1) activations; the f32
    # reference above is the exact module semantics.
    assert err < 1e-1, f"mismatch vs reference: max abs err = {err}"

    print("KERNEL_OK")
</pallas_src>

<mosaic_0001>
module attributes {stable_mosaic.version = 11 : i64} {
  func.func @_mm_bias_kernel(%arg0: i32, %arg1: i32, %arg2: i32, %arg3: memref<256x384xbf16, #tpu.memory_space<vmem>>, %arg4: memref<384x128xbf16, #tpu.memory_space<vmem>>, %arg5: memref<1x128xf32, #tpu.memory_space<vmem>>, %arg6: memref<256x128xf32, #tpu.memory_space<vmem>>, %arg7: memref<256x128xf32, #tpu.memory_space<vmem>>) attributes {dimension_semantics = [#tpu.dimension_semantics<parallel>, #tpu.dimension_semantics<parallel>, #tpu.dimension_semantics<arbitrary>], iteration_bounds = array<i64: 2, 1, 1>, scalar_prefetch = 0 : i64, scratch_operands = 1 : i64, tpu.core_type = #tpu.core_type<tc>, window_params = [{transform_indices = @transform_0, window_bounds = array<i64: 256, 384>}, {transform_indices = @transform_1, window_bounds = array<i64: 384, 128>}, {transform_indices = @transform_2, window_bounds = array<i64: 1, 128>}, {transform_indices = @transform_3, window_bounds = array<i64: 256, 128>}]} {
    %c0_i32 = arith.constant 0 : i32
    %0 = arith.cmpi eq, %arg2, %c0_i32 : i32
    %1 = arith.extui %0 : i1 to i32
    %c0_i32_0 = arith.constant 0 : i32
    %2 = arith.cmpi ne, %1, %c0_i32_0 : i32
    scf.if %2 {
      %cst_10 = arith.constant 0.000000e+00 : f32
      %12 = vector.broadcast %cst_10 : f32 to vector<256x128xf32>
      %c0_11 = arith.constant 0 : index
      %c0_12 = arith.constant 0 : index
      %13 = vector.load %arg7[%c0_11, %c0_12] : memref<256x128xf32, #tpu.memory_space<vmem>>, vector<256x128xf32>
      tpu.vector_store %arg7[%c0_11, %c0_12], %12 {strides = array<i32>} : memref<256x128xf32, #tpu.memory_space<vmem>>, vector<256x128xf32>,
    } else {
    }
    %c0 = arith.constant 0 : index
    %c0_1 = arith.constant 0 : index
    %3 = vector.load %arg7[%c0, %c0_1] : memref<256x128xf32, #tpu.memory_space<vmem>>, vector<256x128xf32>
    %c0_2 = arith.constant 0 : index
    %c0_3 = arith.constant 0 : index
    %4 = vector.load %arg3[%c0_2, %c0_3] : memref<256x384xbf16, #tpu.memory_space<vmem>>, vector<256x384xbf16>
    %c0_4 = arith.constant 0 : index
    %c0_5 = arith.constant 0 : index
    %5 = vector.load %arg4[%c0_4, %c0_5] : memref<384x128xbf16, #tpu.memory_space<vmem>>, vector<384x128xbf16>
    %cst = arith.constant dense<0.000000e+00> : vector<256x128xf32>
    %6 = tpu.matmul %4, %5, %cst {dimension_numbers = #tpu.dot_dimension_numbers<[1], [0], [0], [1], [0, 0, 1, 1], [], []>} : vector<256x384xbf16>, vector<384x128xbf16>, vector<256x128xf32> -> vector<256x128xf32>
    %7 = arith.addf %3, %6 : vector<256x128xf32>
    %c0_6 = arith.constant 0 : index
    %c0_7 = arith.constant 0 : index
    %8 = vector.load %arg7[%c0_6, %c0_7] : memref<256x128xf32, #tpu.memory_space<vmem>>, vector<256x128xf32>
    tpu.vector_store %arg7[%c0_6, %c0_7], %7 {strides = array<i32>} : memref<256x128xf32, #tpu.memory_space<vmem>>, vector<256x128xf32>,
    %c0_i32_8 = arith.constant 0 : i32
    %9 = arith.cmpi eq, %arg2, %c0_i32_8 : i32
    %10 = arith.extui %9 : i1 to i32
    %c0_i32_9 = arith.constant 0 : i32
    %11 = arith.cmpi ne, %10, %c0_i32_9 : i32
    scf.if %11 {
      %c0_10 = arith.constant 0 : index
      %c0_11 = arith.constant 0 : index
      %12 = vector.load %arg7[%c0_10, %c0_11] : memref<256x128xf32, #tpu.memory_space<vmem>>, vector<256x128xf32>
      %c0_12 = arith.constant 0 : index
      %c0_13 = arith.constant 0 : index
      %13 = vector.load %arg5[%c0_12, %c0_13] : memref<1x128xf32, #tpu.memory_space<vmem>>, vector<1x128xf32>
      %14 = vector.broadcast %13 : vector<1x128xf32> to vector<256x128xf32>
      %15 = arith.addf %12, %14 : vector<256x128xf32>
      %c0_14 = arith.constant 0 : index
      %c0_15 = arith.constant 0 : index
      %16 = vector.load %arg6[%c0_14, %c0_15] : memref<256x128xf32, #tpu.memory_space<vmem>>, vector<256x128xf32>
      tpu.vector_store %arg6[%c0_14, %c0_15], %15 {strides = array<i32>} : memref<256x128xf32, #tpu.memory_space<vmem>>, vector<256x128xf32>,
    } else {
    }
    return
  }
  func.func @transform_0(%arg0: i32, %arg1: i32, %arg2: i32) -> (i32, i32) {
    %c0_i32 = arith.constant 0 : i32
    return %arg0, %arg2 : i32, i32
  }
  func.func @transform_1(%arg0: i32, %arg1: i32, %arg2: i32) -> (i32, i32) {
    %c0_i32 = arith.constant 0 : i32
    return %arg2, %arg1 : i32, i32
  }
  func.func @transform_2(%arg0: i32, %arg1: i32, %arg2: i32) -> (i32, i32) {
    %c0_i32 = arith.constant 0 : i32
    %c0_i32_0 = arith.constant 0 : i32
    return %c0_i32, %arg1 : i32, i32
  }
  func.func @transform_3(%arg0: i32, %arg1: i32, %arg2: i32) -> (i32, i32) {
    %c0_i32 = arith.constant 0 : i32
    return %arg0, %arg1 : i32, i32
  }
}

</mosaic_0001>

<llo_original>
// kernel: tpu_custom_call.1
$region0: #{tpu_custom_call.1}
  #allocation0 [shape = 'u32[]', space=smem, size = 0x4, offset = 0x4, fixed_abs, tag = 'smem constant byte address 0x4 - core index']
  #allocation1 [shape = 'u32[72,128]{1,0:T(1,128)}', space=vmem, size = 0x9000, scoped, tag = 'internal scratch']
  #allocation2 [shape = 'f32[256,128]{1,0:T(8,128)}', space=vmem, size = 0x20000, scoped, tag = 'scratch operand']
  %s0 = inlined_call_operand.hbm [shape: bf16[512,384], index: 0, kind: input, shape index: {}]
  %s1 = inlined_call_operand.hbm [shape: bf16[384,128], index: 1, kind: input, shape index: {}]
  %s2 = inlined_call_operand.vmem [shape: f32[1,128], index: 2, kind: input, shape index: {}]
  %s3 = inlined_call_operand.hbm [shape: f32[512,128], index: 3, kind: output, shape index: {}]
  %s4 = sld [smem:[#allocation0]]
  $region61: #{tpu_custom_call.1} parent=0
    _
  %s6 = ssub.s32 1, %s4
  %s7 = scalar_select 0, %s6, %s4
  $region1: #{tpu_custom_call.1} parent=0
    #allocation3 [shape = 'u8[393216]{0}', space=vmem, size = 0x60000, scoped, tag = 'input window, operand 0']
    #allocation4 [shape = 's32[2]{0}', space=sflag, size = 0x8, scoped, tag = 'scoped memory for tpu_custom_call.1']
    #allocation5 [shape = 's32[2]{0}', space=sflag, size = 0x8, scoped, tag = 'scoped memory for tpu_custom_call.1']
    #allocation6 [shape = 'u8[98304]{0}', space=vmem, size = 0x18000, scoped, tag = 'input window, operand 1, single buffered']
    #allocation7 [shape = 's32[1]{0}', space=sflag, size = 0x4, scoped, tag = 'scoped memory for tpu_custom_call.1']
    #allocation8 [shape = 'u8[262144]{0}', space=vmem, size = 0x40000, scoped, tag = 'output window, operand 0']
    %8 = vsyncpa [#allocation4], 0
    %s9 = scalar_lea.sflag [#allocation4], 1
    %10 = vsyncpa %s9, 0
    %11 = vsyncpa [#allocation7], 0
    %12 = vsyncpa [#allocation5], 0
    %s13 = scalar_lea.sflag [#allocation5], 1
    %14 = vsyncpa %s13, 0
    loop: start=0, step=1, limit=4
    $region2: #{tpu_custom_call.1} parent=1 // loop_pre_header
      _
    $region3: #{tpu_custom_call.1} parent=1 // loop_header
      %s16 = sphi 0, %s20
      %p17 = scmp.ge.s32.totalorder %s16, 4
      %s23 = sphi 0, %s42
      %s24 = sphi 0, %s38
      %s25 = sphi 0, %s34
      %s26 = sphi 0, %s23
      %s27 = sphi 0, %s24
      %s28 = sphi 0, %s25
      %s29 = sphi 0, %s26
      %s30 = sphi 0, %s27
      %s31 = sphi 0, %s28
      %s47 = sphi 0, %s49
      %s50 = sphi 0, %s47
      %s51 = sphi 0, %s50
      %s67 = sphi 0, %s51
      %s75 = sphi 0, %s77
      %s78 = sphi 0, %s75
      %s79 = sphi 0, %s78
      %s95 = sphi 0, %s79
      %s101 = sphi 0, %s103
      %s104 = sphi 0, %s101
      %s105 = sphi 0, %s104
      %s121 = sphi 0, %s105
      %s129 = sphi 0, %s131
      %s132 = sphi 0, %s129
      %s133 = sphi 0, %s132
      %s149 = sphi 0, %s133
    $region4: #{tpu_custom_call.1} parent=1 // loop_header_branch
      %19 = sbr.rel (%p17) target = $region8
    $region5: #{tpu_custom_call.1} parent=1 // loop_body
      %s21 = ssub.s32 %s16, 1
      %s22 = ssub.s32 %s16, 2
      %s32 = sadd.s32 1, %s25
      %p33 = scmp.ge.s32.totalorder %s32, 1
      %s34 = scalar_select %p33, 0, %s32
      %s35 = sadd.s32 1, %s24
      %s36 = scalar_select %p33, %s35, %s24
      %p37 = scmp.ge.s32.totalorder %s36, 1
      %s38 = scalar_select %p37, 0, %s36
      %s39 = sadd.s32 1, %s23
      %s40 = scalar_select %p37, %s39, %s23
      %p41 = scmp.ge.s32.totalorder %s40, 2
      %s42 = scalar_select %p41, 0, %s40
      %s43 = ssub.s32 %s23, %s42
      %s44 = ssub.s32 %s25, %s34
      %s45 = sor.u32 %s43, %s44
      %p46 = scmp.eq.s32.totalorder %s45, 0
      %s48 = sadd.s32 %s47, 1
      %s49 = scalar_select %p46, %s47, %s48
      %p52 = pneg %p46
      %p53 = scmp.eq.s32.totalorder %s16, 1
      %p54 = por %p52, %p53
      %p55 = scmp.ne.s32.totalorder %s47, %s50
      %p56 = scmp.eq.s32.totalorder %s16, 0
      %p57 = por %p55, %p56
      %p58 = scmp.ne.s32.totalorder %s47, %s50
      %p59 = scmp.eq.s32.totalorder %s21, 1
      %p60 = por %p58, %p59
      %p61 = scmp.ne.s32.totalorder %s50, %s51
      %p62 = scmp.eq.s32.totalorder %s21, 0
      %p63 = por %p61, %p62
      %p64 = scmp.ne.s32.totalorder %s50, %s51
      %p65 = scmp.eq.s32.totalorder %s22, 1
      %p66 = por %p64, %p65
      %p68 = scmp.ne.s32.totalorder %s51, %s67
      %p69 = scmp.eq.s32.totalorder %s22, 0
      %p70 = por %p68, %p69
      %s71 = ssub.s32 %s25, %s34
      %s72 = ssub.s32 %s24, %s38
      %s73 = sor.u32 %s71, %s72
      %p74 = scmp.eq.s32.totalorder %s73, 0
      %s76 = sadd.s32 %s75, 1
      %s77 = scalar_select %p74, %s75, %s76
      %p80 = pneg %p74
      %p81 = scmp.eq.s32.totalorder %s16, 1
      %p82 = por %p80, %p81
      %p83 = scmp.ne.s32.totalorder %s75, %s78
      %p84 = scmp.eq.s32.totalorder %s16, 0
      %p85 = por %p83, %p84
      %p86 = scmp.ne.s32.totalorder %s75, %s78
      %p87 = scmp.eq.s32.totalorder %s21, 1
      %p88 = por %p86, %p87
      %p89 = scmp.ne.s32.totalorder %s78, %s79
      %p90 = scmp.eq.s32.totalorder %s21, 0
      %p91 = por %p89, %p90
      %p92 = scmp.ne.s32.totalorder %s78, %s79
      %p93 = scmp.eq.s32.totalorder %s22, 1
      %p94 = por %p92, %p93
      %p96 = scmp.ne.s32.totalorder %s79, %s95
      %p97 = scmp.eq.s32.totalorder %s22, 0
      %p98 = por %p96, %p97
      %s99 = ssub.s32 %s24, %s38
      %p100 = scmp.eq.s32.totalorder %s99, 0
      %s102 = sadd.s32 %s101, 1
      %s103 = scalar_select %p100, %s101, %s102
      %p106 = pneg %p100
      %p107 = scmp.eq.s32.totalorder %s16, 1
      %p108 = por %p106, %p107
      %p109 = scmp.ne.s32.totalorder %s101, %s104
      %p110 = scmp.eq.s32.totalorder %s16, 0
      %p111 = por %p109, %p110
      %p112 = scmp.ne.s32.totalorder %s101, %s104
      %p113 = scmp.eq.s32.totalorder %s21, 1
      %p114 = por %p112, %p113
      %p115 = scmp.ne.s32.totalorder %s104, %s105
      %p116 = scmp.eq.s32.totalorder %s21, 0
      %p117 = por %p115, %p116
      %p118 = scmp.ne.s32.totalorder %s104, %s105
      %p119 = scmp.eq.s32.totalorder %s22, 1
      %p120 = por %p118, %p119
      %p122 = scmp.ne.s32.totalorder %s105, %s121
      %p123 = scmp.eq.s32.totalorder %s22, 0
      %p124 = por %p122, %p123
      %s125 = ssub.s32 %s23, %s42
      %s126 = ssub.s32 %s24, %s38
      %s127 = sor.u32 %s125, %s126
      %p128 = scmp.eq.s32.totalorder %s127, 0
      %s130 = sadd.s32 %s129, 1
      %s131 = scalar_select %p128, %s129, %s130
      %p134 = pneg %p128
      %p135 = scmp.eq.s32.totalorder %s16, 1
      %p136 = por %p134, %p135
      %p137 = scmp.ne.s32.totalorder %s129, %s132
      %p138 = scmp.eq.s32.totalorder %s16, 0
      %p139 = por %p137, %p138
      %p140 = scmp.ne.s32.totalorder %s129, %s132
      %p141 = scmp.eq.s32.totalorder %s21, 1
      %p142 = por %p140, %p141
      %p143 = scmp.ne.s32.totalorder %s132, %s133
      %p144 = scmp.eq.s32.totalorder %s21, 0
      %p145 = por %p143, %p144
      %p146 = scmp.ne.s32.totalorder %s132, %s133
      %p147 = scmp.eq.s32.totalorder %s22, 1
      %p148 = por %p146, %p147
      %p150 = scmp.ne.s32.totalorder %s133, %s149
      %p151 = scmp.eq.s32.totalorder %s22, 0
      %p152 = por %p150, %p151
      %p153 = scmp.le.s32.totalorder 1, %s16
      %p154 = scmp.lt.s32.totalorder %s16, 3
      %p155 = pnand %p153, %p154
      %p156 = pneg %p155
      // Predicated region
      $region9: #{tpu_custom_call.1} parent=5 // pred_check
        _
      $region10: #{tpu_custom_call.1} parent=5 // pred_check_branch
        %158 = sbr.rel (%p155) target = $region12
      $region11: #{tpu_custom_call.1} parent=5 // pred_region
        %s159 = ssub.s32 %s16, 1
        // Predicated region
        $region13: #{tpu_custom_call.1} parent=11 // pred_check
          %p160 = pneg %p91
        $region14: #{tpu_custom_call.1} parent=11 // pred_check_branch
          %162 = sbr.rel (%p160) target = $region16
        $region15: #{tpu_custom_call.1} parent=11 // pred_region
          %s163 = smul.u32 48, %s28
          %165 = vsyncadd [#allocation7], 0
          %s166 = sadd.s32 %s27, %s163
          %s167 = smul.addr %s166, 4
          %s168 = scalar_lea.hbm %s1, %s167
          %s169 = sshll.u32 %s168, 4
          %s170 = int_to_ptr.hbm [resolvable:$true] %s169
          %s171 = sshll.u32 [#allocation6], 4
          %s172 = int_to_ptr.vmem [resolvable:$true] %s171
          %177 = dma.hbm_to_vmem [thread:$0]  %s170, 3072, %s172, [#allocation7], 64, 64, 4
        $region16: #{tpu_custom_call.1} parent=11 // pred_fallthru
          _
        // Predicated region
        $region17: #{tpu_custom_call.1} parent=11 // pred_check
          %p178 = pneg %p117
        $region18: #{tpu_custom_call.1} parent=11 // pred_check_branch
          %180 = sbr.rel (%p178) target = $region20
        $region19: #{tpu_custom_call.1} parent=11 // pred_region
          %p181 = scmp.lt.s32.totalorder %s27, 0
          %s182 = scalar_select %p181, %s27, 0
          %s183 = scalar_lea.vmem %s2, %s182
        $region20: #{tpu_custom_call.1} parent=11 // pred_fallthru
          _
      $region12: #{tpu_custom_call.1} parent=5 // pred_fallthru
        _
      %p184 = scmp.lt.s32.totalorder %s16, 2
      // Predicated region
      $region21: #{tpu_custom_call.1} parent=5 // pred_check
        %p185 = pneg %p184
      $region22: #{tpu_custom_call.1} parent=5 // pred_check_branch
        %187 = sbr.rel (%p185) target = $region24
      $region23: #{tpu_custom_call.1} parent=5 // pred_region
        // Predicated region
        $region25: #{tpu_custom_call.1} parent=23 // pred_check
          %p188 = pneg %p57
        $region26: #{tpu_custom_call.1} parent=23 // pred_check_branch
          %190 = sbr.rel (%p188) target = $region28
        $region27: #{tpu_custom_call.1} parent=23 // pred_region
          %s191 = sand.u32 %s47, 1
          %s192 = scalar_lea.sflag [#allocation4], %s191
          %s193 = sand.u32 %s47, 1
          %s194 = smul.addr %s193, 384
          %s195 = scalar_lea.vmem [#allocation3], %s194
          %s196 = smul.u32 32, %s23
          %s197 = smul.u32 3, %s25
          %199 = vsyncadd %s192, 0
          %s200 = smul.addr %s196, 3
          %s201 = sadd.s32 %s197, %s200
          %s202 = smul.addr %s201, 4
          %s203 = scalar_lea.hbm %s0, %s202
          %s204 = sshll.u32 %s203, 4
          %s205 = int_to_ptr.hbm [resolvable:$true] %s204
          %s206 = sshll.u32 %s195, 4
          %s207 = int_to_ptr.vmem [resolvable:$true] %s206
          %212 = dma.hbm_to_vmem [thread:$0]  %s205, 6144, %s207, %s192, 192, 192, 12
        $region28: #{tpu_custom_call.1} parent=23 // pred_fallthru
          _
      $region24: #{tpu_custom_call.1} parent=5 // pred_fallthru
        _
      %p213 = scmp.le.s32.totalorder 1, %s16
      %p214 = scmp.lt.s32.totalorder %s16, 3
      %p215 = pnand %p213, %p214
      %p216 = pneg %p215
      // Predicated region
      $region29: #{tpu_custom_call.1} parent=5 // pred_check
        _
      $region30: #{tpu_custom_call.1} parent=5 // pred_check_branch
        %218 = sbr.rel (%p215) target = $region32
      $region31: #{tpu_custom_call.1} parent=5 // pred_region
        %s219 = ssub.s32 %s16, 1
        %s220 = sand.u32 %s50, 1
        %s221 = scalar_lea.sflag [#allocation4], %s220
        %s222 = sand.u32 %s50, 1
        %s223 = smul.addr %s222, 384
        %s224 = scalar_lea.vmem [#allocation3], %s223
        // Predicated region
        $region33: #{tpu_custom_call.1} parent=31 // pred_check
          %p225 = pneg %p63
        $region34: #{tpu_custom_call.1} parent=31 // pred_check_branch
          %227 = sbr.rel (%p225) target = $region36
        $region35: #{tpu_custom_call.1} parent=31 // pred_region
          %229 = dma.done %s221, 6144
        $region36: #{tpu_custom_call.1} parent=31 // pred_fallthru
          _
        // Predicated region
        $region37: #{tpu_custom_call.1} parent=31 // pred_check
          %p230 = pneg %p91
        $region38: #{tpu_custom_call.1} parent=31 // pred_check_branch
          %232 = sbr.rel (%p230) target = $region40
        $region39: #{tpu_custom_call.1} parent=31 // pred_region
          %234 = dma.done [#allocation7], 3072
        $region40: #{tpu_custom_call.1} parent=31 // pred_fallthru
          _
        %s235 = sand.u32 %s50, 1
        %s236 = scalar_lea.sflag [#allocation4], %s235
        %s237 = sand.u32 %s50, 1
        %s238 = smul.addr %s237, 384
        %s239 = scalar_lea.vmem [#allocation3], %s238
        %p240 = pneg %p63
        %p241 = pneg %p60
        %p242 = pneg %p91
        %p243 = pneg %p88
        %p244 = scmp.lt.s32.totalorder %s27, 0
        %s245 = scalar_select %p244, %s27, 0
        %s246 = scalar_lea.vmem %s2, %s245
        %p247 = pneg %p117
        %p248 = pneg %p114
        %p249 = pneg %p145
        %p250 = pneg %p142
        %s251 = sand.u32 %s132, 1
        %s252 = scalar_lea.sflag [#allocation5], %s251
        %s253 = sand.u32 %s132, 1
        %s254 = smul.addr %s253, 256
        %s255 = scalar_lea.vmem [#allocation8], %s254
        %s256 = smul.u32 32, %s26
        %s257 = smul.u32 3, %s28
        %s258 = smul.u32 48, %s28
        %p259 = scmp.lt.s32.totalorder %s27, 0
        %s260 = scalar_select %p259, %s27, 0
        %s261 = scalar_lea.vmem %s2, %s260
        %s262 = smul.u32 32, %s26
        %p263 = scmp.eq.s32.totalorder %s28, 0
        // Predicated region
        $region41: #{tpu_custom_call.1} parent=31 // pred_check
          %p264 = pneg %p263
        $region42: #{tpu_custom_call.1} parent=31 // pred_check_branch
          %266 = sbr.rel (%p264) target = $region44
        $region43: #{tpu_custom_call.1} parent=31 // pred_region
          %267 = vst [vmem:[#allocation2] sm:$0xff] 0.0
          %268 = vst [vmem:[#allocation2 + $0x8] sm:$0xff] 0.0
          %269 = vst [vmem:[#allocation2 + $0x10] sm:$0xff] 0.0
          %270 = vst [vmem:[#allocation2 + $0x18] sm:$0xff] 0.0
          %271 = vst [vmem:[#allocation2 + $0x20] sm:$0xff] 0.0
          %272 = vst [vmem:[#allocation2 + $0x28] sm:$0xff] 0.0
          %273 = vst [vmem:[#allocation2 + $0x30] sm:$0xff] 0.0
          %274 = vst [vmem:[#allocation2 + $0x38] sm:$0xff] 0.0
          %275 = vst [vmem:[#allocation2 + $0x40] sm:$0xff] 0.0
          %276 = vst [vmem:[#allocation2 + $0x48] sm:$0xff] 0.0
          %277 = vst [vmem:[#allocation2 + $0x50] sm:$0xff] 0.0
          %278 = vst [vmem:[#allocation2 + $0x58] sm:$0xff] 0.0
          %279 = vst [vmem:[#allocation2 + $0x60] sm:$0xff] 0.0
          %280 = vst [vmem:[#allocation2 + $0x68] sm:$0xff] 0.0
          %281 = vst [vmem:[#allocation2 + $0x70] sm:$0xff] 0.0
          %282 = vst [vmem:[#allocation2 + $0x78] sm:$0xff] 0.0
          %283 = vst [vmem:[#allocation2 + $0x80] sm:$0xff] 0.0
          %284 = vst [vmem:[#allocation2 + $0x88] sm:$0xff] 0.0
          %285 = vst [vmem:[#allocation2 + $0x90] sm:$0xff] 0.0
          %286 = vst [vmem:[#allocation2 + $0x98] sm:$0xff] 0.0
          %287 = vst [vmem:[#allocation2 + $0xa0] sm:$0xff] 0.0
          %288 = vst [vmem:[#allocation2 + $0xa8] sm:$0xff] 0.0
          %289 = vst [vmem:[#allocation2 + $0xb0] sm:$0xff] 0.0
          %290 = vst [vmem:[#allocation2 + $0xb8] sm:$0xff] 0.0
          %291 = vst [vmem:[#allocation2 + $0xc0] sm:$0xff] 0.0
          %292 = vst [vmem:[#allocation2 + $0xc8] sm:$0xff] 0.0
          %293 = vst [vmem:[#allocation2 + $0xd0] sm:$0xff] 0.0
          %294 = vst [vmem:[#allocation2 + $0xd8] sm:$0xff] 0.0
          %295 = vst [vmem:[#allocation2 + $0xe0] sm:$0xff] 0.0
          %296 = vst [vmem:[#allocation2 + $0xe8] sm:$0xff] 0.0
          %297 = vst [vmem:[#allocation2 + $0xf0] sm:$0xff] 0.0
          %298 = vst [vmem:[#allocation2 + $0xf8] sm:$0xff] 0.0
        $region44: #{tpu_custom_call.1} parent=31 // pred_fallthru
          _
        %v299 = vld [vmem:[#allocation2] sm:$0xff]
        %v300 = vld [vmem:[#allocation2 + $0x8] sm:$0xff]
        %v301 = vld [vmem:[#allocation2 + $0x10] sm:$0xff]
        %v302 = vld [vmem:[#allocation2 + $0x18] sm:$0xff]
        %v303 = vld [vmem:[#allocation2 + $0x20] sm:$0xff]
        %v304 = vld [vmem:[#allocation2 + $0x28] sm:$0xff]
        %v305 = vld [vmem:[#allocation2 + $0x30] sm:$0xff]
        %v306 = vld [vmem:[#allocation2 + $0x38] sm:$0xff]
        %v307 = vld [vmem:[#allocation2 + $0x40] sm:$0xff]
        %v308 = vld [vmem:[#allocation2 + $0x48] sm:$0xff]
        %v309 = vld [vmem:[#allocation2 + $0x50] sm:$0xff]
        %v310 = vld [vmem:[#allocation2 + $0x58] sm:$0xff]
        %v311 = vld [vmem:[#allocation2 + $0x60] sm:$0xff]
        %v312 = vld [vmem:[#allocation2 + $0x68] sm:$0xff]
        %v313 = vld [vmem:[#allocation2 + $0x70] sm:$0xff]
        %v314 = vld [vmem:[#allocation2 + $0x78] sm:$0xff]
        %v315 = vld [vmem:[#allocation2 + $0x80] sm:$0xff]
        %v316 = vld [vmem:[#allocation2 + $0x88] sm:$0xff]
        %v317 = vld [vmem:[#allocation2 + $0x90] sm:$0xff]
        %v318 = vld [vmem:[#allocation2 + $0x98] sm:$0xff]
        %v319 = vld [vmem:[#allocation2 + $0xa0] sm:$0xff]
        %v320 = vld [vmem:[#allocation2 + $0xa8] sm:$0xff]
        %v321 = vld [vmem:[#allocation2 + $0xb0] sm:$0xff]
        %v322 = vld [vmem:[#allocation2 + $0xb8] sm:$0xff]
        %v323 = vld [vmem:[#allocation2 + $0xc0] sm:$0xff]
        %v324 = vld [vmem:[#allocation2 + $0xc8] sm:$0xff]
        %v325 = vld [vmem:[#allocation2 + $0xd0] sm:$0xff]
        %v326 = vld [vmem:[#allocation2 + $0xd8] sm:$0xff]
        %v327 = vld [vmem:[#allocation2 + $0xe0] sm:$0xff]
        %v328 = vld [vmem:[#allocation2 + $0xe8] sm:$0xff]
        %v329 = vld [vmem:[#allocation2 + $0xf0] sm:$0xff]
        %v330 = vld [vmem:[#allocation2 + $0xf8] sm:$0xff]
        %v331 = vld [vmem:[%s224] sm:$0xff]
        %v332 = vld [vmem:[%s224 + $0x8] sm:$0xf]
        %v333 = vld [vmem:[%s224 + $0xc] sm:$0xff]
        %v334 = vld [vmem:[%s224 + $0x14] sm:$0xf]
        %v335 = vld [vmem:[%s224 + $0x18] sm:$0xff]
        %v336 = vld [vmem:[%s224 + $0x20] sm:$0xf]
        %v337 = vld [vmem:[%s224 + $0x24] sm:$0xff]
        %v338 = vld [vmem:[%s224 + $0x2c] sm:$0xf]
        %v339 = vld [vmem:[%s224 + $0x30] sm:$0xff]
        %v340 = vld [vmem:[%s224 + $0x38] sm:$0xf]
        %v341 = vld [vmem:[%s224 + $0x3c] sm:$0xff]
        %v342 = vld [vmem:[%s224 + $0x44] sm:$0xf]
        %v343 = vld [vmem:[%s224 + $0x48] sm:$0xff]
        %v344 = vld [vmem:[%s224 + $0x50] sm:$0xf]
        %v345 = vld [vmem:[%s224 + $0x54] sm:$0xff]
        %v346 = vld [vmem:[%s224 + $0x5c] sm:$0xf]
        %v347 = vld [vmem:[%s224 + $0x60] sm:$0xff]
        %v348 = vld [vmem:[%s224 + $0x68] sm:$0xf]
        %v349 = vld [vmem:[%s224 + $0x6c] sm:$0xff]
        %v350 = vld [vmem:[%s224 + $0x74] sm:$0xf]
        %v351 = vld [vmem:[%s224 + $0x78] sm:$0xff]
        %v352 = vld [vmem:[%s224 + $0x80] sm:$0xf]
        %v353 = vld [vmem:[%s224 + $0x84] sm:$0xff]
        %v354 = vld [vmem:[%s224 + $0x8c] sm:$0xf]
        %v355 = vld [vmem:[%s224 + $0x90] sm:$0xff]
        %v356 = vld [vmem:[%s224 + $0x98] sm:$0xf]
        %v357 = vld [vmem:[%s224 + $0x9c] sm:$0xff]
        %v358 = vld [vmem:[%s224 + $0xa4] sm:$0xf]
        %v359 = vld [vmem:[%s224 + $0xa8] sm:$0xff]
        %v360 = vld [vmem:[%s224 + $0xb0] sm:$0xf]
        %v361 = vld [vmem:[%s224 + $0xb4] sm:$0xff]
        %v362 = vld [vmem:[%s224 + $0xbc] sm:$0xf]
        %v363 = vld [vmem:[%s224 + $0xc0] sm:$0xff]
        %v364 = vld [vmem:[%s224 + $0xc8] sm:$0xf]
        %v365 = vld [vmem:[%s224 + $0xcc] sm:$0xff]
        %v366 = vld [vmem:[%s224 + $0xd4] sm:$0xf]
        %v367 = vld [vmem:[%s224 + $0xd8] sm:$0xff]
        %v368 = vld [vmem:[%s224 + $0xe0] sm:$0xf]
        %v369 = vld [vmem:[%s224 + $0xe4] sm:$0xff]
        %v370 = vld [vmem:[%s224 + $0xec] sm:$0xf]
        %v371 = vld [vmem:[%s224 + $0xf0] sm:$0xff]
        %v372 = vld [vmem:[%s224 + $0xf8] sm:$0xf]
        %v373 = vld [vmem:[%s224 + $0xfc] sm:$0xff]
        %v374 = vld [vmem:[%s224 + $0x104] sm:$0xf]
        %v375 = vld [vmem:[%s224 + $0x108] sm:$0xff]
        %v376 = vld [vmem:[%s224 + $0x110] sm:$0xf]
        %v377 = vld [vmem:[%s224 + $0x114] sm:$0xff]
        %v378 = vld [vmem:[%s224 + $0x11c] sm:$0xf]
        %v379 = vld [vmem:[%s224 + $0x120] sm:$0xff]
        %v380 = vld [vmem:[%s224 + $0x128] sm:$0xf]
        %v381 = vld [vmem:[%s224 + $0x12c] sm:$0xff]
        %v382 = vld [vmem:[%s224 + $0x134] sm:$0xf]
        %v383 = vld [vmem:[%s224 + $0x138] sm:$0xff]
        %v384 = vld [vmem:[%s224 + $0x140] sm:$0xf]
        %v385 = vld [vmem:[%s224 + $0x144] sm:$0xff]
        %v386 = vld [vmem:[%s224 + $0x14c] sm:$0xf]
        %v387 = vld [vmem:[%s224 + $0x150] sm:$0xff]
        %v388 = vld [vmem:[%s224 + $0x158] sm:$0xf]
        %v389 = vld [vmem:[%s224 + $0x15c] sm:$0xff]
        %v390 = vld [vmem:[%s224 + $0x164] sm:$0xf]
        %v391 = vld [vmem:[%s224 + $0x168] sm:$0xff]
        %v392 = vld [vmem:[%s224 + $0x170] sm:$0xf]
        %v393 = vld [vmem:[%s224 + $0x174] sm:$0xff]
        %v394 = vld [vmem:[%s224 + $0x17c] sm:$0xf]
        %v395 = vld [vmem:[#allocation6] sm:$0xf]
        %v396 = vld [vmem:[#allocation6 + $0x4] sm:$0xf]
        %v397 = vld [vmem:[#allocation6 + $0x8] sm:$0xf]
        %v398 = vld [vmem:[#allocation6 + $0xc] sm:$0xf]
        %v399 = vld [vmem:[#allocation6 + $0x10] sm:$0xf]
        %v400 = vld [vmem:[#allocation6 + $0x14] sm:$0xf]
        %v401 = vld [vmem:[#allocation6 + $0x18] sm:$0xf]
        %v402 = vld [vmem:[#allocation6 + $0x1c] sm:$0xf]
        %v403 = vld [vmem:[#allocation6 + $0x20] sm:$0xf]
        %v404 = vld [vmem:[#allocation6 + $0x24] sm:$0xf]
        %v405 = vld [vmem:[#allocation6 + $0x28] sm:$0xf]
        %v406 = vld [vmem:[#allocation6 + $0x2c] sm:$0xf]
        %v407 = vld [vmem:[#allocation6 + $0x30] sm:$0xf]
        %v408 = vld [vmem:[#allocation6 + $0x34] sm:$0xf]
        %v409 = vld [vmem:[#allocation6 + $0x38] sm:$0xf]
        %v410 = vld [vmem:[#allocation6 + $0x3c] sm:$0xf]
        %v411 = vld [vmem:[#allocation6 + $0x40] sm:$0xf]
        %v412 = vld [vmem:[#allocation6 + $0x44] sm:$0xf]
        %v413 = vld [vmem:[#allocation6 + $0x48] sm:$0xf]
        %v414 = vld [vmem:[#allocation6 + $0x4c] sm:$0xf]
        %v415 = vld [vmem:[#allocation6 + $0x50] sm:$0xf]
        %v416 = vld [vmem:[#allocation6 + $0x54] sm:$0xf]
        %v417 = vld [vmem:[#allocation6 + $0x58] sm:$0xf]
        %v418 = vld [vmem:[#allocation6 + $0x5c] sm:$0xf]
        %v419 = vld [vmem:[#allocation6 + $0x60] sm:$0xf]
        %v420 = vld [vmem:[#allocation6 + $0x64] sm:$0xf]
        %v421 = vld [vmem:[#allocation6 + $0x68] sm:$0xf]
        %v422 = vld [vmem:[#allocation6 + $0x6c] sm:$0xf]
        %v423 = vld [vmem:[#allocation6 + $0x70] sm:$0xf]
        %v424 = vld [vmem:[#allocation6 + $0x74] sm:$0xf]
        %v425 = vld [vmem:[#allocation6 + $0x78] sm:$0xf]
        %v426 = vld [vmem:[#allocation6 + $0x7c] sm:$0xf]
        %v427 = vld [vmem:[#allocation6 + $0x80] sm:$0xf]
        %v428 = vld [vmem:[#allocation6 + $0x84] sm:$0xf]
        %v429 = vld [vmem:[#allocation6 + $0x88] sm:$0xf]
        %v430 = vld [vmem:[#allocation6 + $0x8c] sm:$0xf]
        %v431 = vld [vmem:[#allocation6 + $0x90] sm:$0xf]
        %v432 = vld [vmem:[#allocation6 + $0x94] sm:$0xf]
        %v433 = vld [vmem:[#allocation6 + $0x98] sm:$0xf]
        %v434 = vld [vmem:[#allocation6 + $0x9c] sm:$0xf]
        %v435 = vld [vmem:[#allocation6 + $0xa0] sm:$0xf]
        %v436 = vld [vmem:[#allocation6 + $0xa4] sm:$0xf]
        %v437 = vld [vmem:[#allocation6 + $0xa8] sm:$0xf]
        %v438 = vld [vmem:[#allocation6 + $0xac] sm:$0xf]
        %v439 = vld [vmem:[#allocation6 + $0xb0] sm:$0xf]
        %v440 = vld [vmem:[#allocation6 + $0xb4] sm:$0xf]
        %v441 = vld [vmem:[#allocation6 + $0xb8] sm:$0xf]
        %v442 = vld [vmem:[#allocation6 + $0xbc] sm:$0xf]
        %v507 = vunpack.c.l.b16 %v331
        %v508 = vunpack.c.h.b16 %v331
        %v509 = vunpack.c.l.b16 %v332
        %v510 = vunpack.c.l.b16 %v333
        %v511 = vunpack.c.h.b16 %v333
        %v512 = vunpack.c.l.b16 %v334
        %v513 = vunpack.c.l.b16 %v335
        %v514 = vunpack.c.h.b16 %v335
        %v515 = vunpack.c.l.b16 %v336
        %v516 = vunpack.c.l.b16 %v337
        %v517 = vunpack.c.h.b16 %v337
        %v518 = vunpack.c.l.b16 %v338
        %v519 = vunpack.c.l.b16 %v339
        %v520 = vunpack.c.h.b16 %v339
        %v521 = vunpack.c.l.b16 %v340
        %v522 = vunpack.c.l.b16 %v341
        %v523 = vunpack.c.h.b16 %v341
        %v524 = vunpack.c.l.b16 %v342
        %v525 = vunpack.c.l.b16 %v343
        %v526 = vunpack.c.h.b16 %v343
        %v527 = vunpack.c.l.b16 %v344
        %v528 = vunpack.c.l.b16 %v345
        %v529 = vunpack.c.h.b16 %v345
        %v530 = vunpack.c.l.b16 %v346
        %v531 = vunpack.c.l.b16 %v347
        %v532 = vunpack.c.h.b16 %v347
        %v533 = vunpack.c.l.b16 %v348
        %v534 = vunpack.c.l.b16 %v349
        %v535 = vunpack.c.h.b16 %v349
        %v536 = vunpack.c.l.b16 %v350
        %v537 = vunpack.c.l.b16 %v351
        %v538 = vunpack.c.h.b16 %v351
        %v539 = vunpack.c.l.b16 %v352
        %v540 = vunpack.c.l.b16 %v353
        %v541 = vunpack.c.h.b16 %v353
        %v542 = vunpack.c.l.b16 %v354
        %v543 = vunpack.c.l.b16 %v355
        %v544 = vunpack.c.h.b16 %v355
        %v545 = vunpack.c.l.b16 %v356
        %v546 = vunpack.c.l.b16 %v357
        %v547 = vunpack.c.h.b16 %v357
        %v548 = vunpack.c.l.b16 %v358
        %v549 = vunpack.c.l.b16 %v359
        %v550 = vunpack.c.h.b16 %v359
        %v551 = vunpack.c.l.b16 %v360
        %v552 = vunpack.c.l.b16 %v361
        %v553 = vunpack.c.h.b16 %v361
        %v554 = vunpack.c.l.b16 %v362
        %v555 = vunpack.c.l.b16 %v363
        %v556 = vunpack.c.h.b16 %v363
        %v557 = vunpack.c.l.b16 %v364
        %v558 = vunpack.c.l.b16 %v365
        %v559 = vunpack.c.h.b16 %v365
        %v560 = vunpack.c.l.b16 %v366
        %v561 = vunpack.c.l.b16 %v367
        %v562 = vunpack.c.h.b16 %v367
        %v563 = vunpack.c.l.b16 %v368
        %v564 = vunpack.c.l.b16 %v369
        %v565 = vunpack.c.h.b16 %v369
        %v566 = vunpack.c.l.b16 %v370
        %v567 = vunpack.c.l.b16 %v371
        %v568 = vunpack.c.h.b16 %v371
        %v569 = vunpack.c.l.b16 %v372
        %v570 = vunpack.c.l.b16 %v373
        %v571 = vunpack.c.h.b16 %v373
        %v572 = vunpack.c.l.b16 %v374
        %v573 = vunpack.c.l.b16 %v375
        %v574 = vunpack.c.h.b16 %v375
        %v575 = vunpack.c.l.b16 %v376
        %v576 = vunpack.c.l.b16 %v377
        %v577 = vunpack.c.h.b16 %v377
        %v578 = vunpack.c.l.b16 %v378
        %v579 = vunpack.c.l.b16 %v379
        %v580 = vunpack.c.h.b16 %v379
        %v581 = vunpack.c.l.b16 %v380
        %v582 = vunpack.c.l.b16 %v381
        %v583 = vunpack.c.h.b16 %v381
        %v584 = vunpack.c.l.b16 %v382
        %v585 = vunpack.c.l.b16 %v383
        %v586 = vunpack.c.h.b16 %v383
        %v587 = vunpack.c.l.b16 %v384
        %v588 = vunpack.c.l.b16 %v385
        %v589 = vunpack.c.h.b16 %v385
        %v590 = vunpack.c.l.b16 %v386
        %v591 = vunpack.c.l.b16 %v387
        %v592 = vunpack.c.h.b16 %v387
        %v593 = vunpack.c.l.b16 %v388
        %v594 = vunpack.c.l.b16 %v389
        %v595 = vunpack.c.h.b16 %v389
        %v596 = vunpack.c.l.b16 %v390
        %v597 = vunpack.c.l.b16 %v391
        %v598 = vunpack.c.h.b16 %v391
        %v599 = vunpack.c.l.b16 %v392
        %v600 = vunpack.c.l.b16 %v393
        %v601 = vunpack.c.h.b16 %v393
        %v602 = vunpack.c.l.b16 %v394
        %v603 = vpack.c.b16 %v510, %v507
        %v604 = vpack.c.b16 %v511, %v508
        %v605 = vpack.c.b16 %v512, %v509
        %v606 = vpack.c.b16 %v516, %v513
        %v607 = vpack.c.b16 %v517, %v514
        %v608 = vpack.c.b16 %v518, %v515
        %v609 = vpack.c.b16 %v522, %v519
        %v610 = vpack.c.b16 %v523, %v520
        %v611 = vpack.c.b16 %v524, %v521
        %v612 = vpack.c.b16 %v528, %v525
        %v613 = vpack.c.b16 %v529, %v526
        %v614 = vpack.c.b16 %v530, %v527
        %v615 = vpack.c.b16 %v534, %v531
        %v616 = vpack.c.b16 %v535, %v532
        %v617 = vpack.c.b16 %v536, %v533
        %v618 = vpack.c.b16 %v540, %v537
        %v619 = vpack.c.b16 %v541, %v538
        %v620 = vpack.c.b16 %v542, %v539
        %v621 = vpack.c.b16 %v546, %v543
        %v622 = vpack.c.b16 %v547, %v544
        %v623 = vpack.c.b16 %v548, %v545
        %v624 = vpack.c.b16 %v552, %v549
        %v625 = vpack.c.b16 %v553, %v550
        %v626 = vpack.c.b16 %v554, %v551
        %v627 = vpack.c.b16 %v558, %v555
        %v628 = vpack.c.b16 %v559, %v556
        %v629 = vpack.c.b16 %v560, %v557
        %v630 = vpack.c.b16 %v564, %v561
        %v631 = vpack.c.b16 %v565, %v562
        %v632 = vpack.c.b16 %v566, %v563
        %v633 = vpack.c.b16 %v570, %v567
        %v634 = vpack.c.b16 %v571, %v568
        %v635 = vpack.c.b16 %v572, %v569
        %v636 = vpack.c.b16 %v576, %v573
        %v637 = vpack.c.b16 %v577, %v574
        %v638 = vpack.c.b16 %v578, %v575
        %v639 = vpack.c.b16 %v582, %v579
        %v640 = vpack.c.b16 %v583, %v580
        %v641 = vpack.c.b16 %v584, %v581
        %v642 = vpack.c.b16 %v588, %v585
        %v643 = vpack.c.b16 %v589, %v586
        %v644 = vpack.c.b16 %v590, %v587
        %v645 = vpack.c.b16 %v594, %v591
        %v646 = vpack.c.b16 %v595, %v592
        %v647 = vpack.c.b16 %v596, %v593
        %v648 = vpack.c.b16 %v600, %v597
        %v649 = vpack.c.b16 %v601, %v598
        %v650 = vpack.c.b16 %v602, %v599
        %v747 = vunpack.c.l.b16 %v395
        %v748 = vunpack.c.l.b16 %v396
        %v749 = vunpack.c.l.b16 %v397
        %v750 = vunpack.c.l.b16 %v398
        %v751 = vunpack.c.l.b16 %v399
        %v752 = vunpack.c.l.b16 %v400
        %v753 = vunpack.c.l.b16 %v401
        %v754 = vunpack.c.l.b16 %v402
        %v755 = vunpack.c.l.b16 %v403
        %v756 = vunpack.c.l.b16 %v404
        %v757 = vunpack.c.l.b16 %v405
        %v758 = vunpack.c.l.b16 %v406
        %v759 = vunpack.c.l.b16 %v407
        %v760 = vunpack.c.l.b16 %v408
        %v761 = vunpack.c.l.b16 %v409
        %v762 = vunpack.c.l.b16 %v410
        %v763 = vunpack.c.l.b16 %v411
        %v764 = vunpack.c.l.b16 %v412
        %v765 = vunpack.c.l.b16 %v413
        %v766 = vunpack.c.l.b16 %v414
        %v767 = vunpack.c.l.b16 %v415
        %v768 = vunpack.c.l.b16 %v416
        %v769 = vunpack.c.l.b16 %v417
        %v770 = vunpack.c.l.b16 %v418
        %v771 = vunpack.c.l.b16 %v419
        %v772 = vunpack.c.l.b16 %v420
        %v773 = vunpack.c.l.b16 %v421
        %v774 = vunpack.c.l.b16 %v422
        %v775 = vunpack.c.l.b16 %v423
        %v776 = vunpack.c.l.b16 %v424
        %v777 = vunpack.c.l.b16 %v425
        %v778 = vunpack.c.l.b16 %v426
        %v779 = vunpack.c.l.b16 %v427
        %v780 = vunpack.c.l.b16 %v428
        %v781 = vunpack.c.l.b16 %v429
        %v782 = vunpack.c.l.b16 %v430
        %v783 = vunpack.c.l.b16 %v431
        %v784 = vunpack.c.l.b16 %v432
        %v785 = vunpack.c.l.b16 %v433
        %v786 = vunpack.c.l.b16 %v434
        %v787 = vunpack.c.l.b16 %v435
        %v788 = vunpack.c.l.b16 %v436
        %v789 = vunpack.c.l.b16 %v437
        %v790 = vunpack.c.l.b16 %v438
        %v791 = vunpack.c.l.b16 %v439
        %v792 = vunpack.c.l.b16 %v440
        %v793 = vunpack.c.l.b16 %v441
        %v794 = vunpack.c.l.b16 %v442
        %v795 = vpack.c.b16 %v748, %v747
        %v796 = vpack.c.b16 %v750, %v749
        %v797 = vpack.c.b16 %v752, %v751
        %v798 = vpack.c.b16 %v754, %v753
        %v799 = vpack.c.b16 %v756, %v755
        %v800 = vpack.c.b16 %v758, %v757
        %v801 = vpack.c.b16 %v760, %v759
        %v802 = vpack.c.b16 %v762, %v761
        %v803 = vpack.c.b16 %v764, %v763
        %v804 = vpack.c.b16 %v766, %v765
        %v805 = vpack.c.b16 %v768, %v767
        %v806 = vpack.c.b16 %v770, %v769
        %v807 = vpack.c.b16 %v772, %v771
        %v808 = vpack.c.b16 %v774, %v773
        %v809 = vpack.c.b16 %v776, %v775
        %v810 = vpack.c.b16 %v778, %v777
        %v811 = vpack.c.b16 %v780, %v779
        %v812 = vpack.c.b16 %v782, %v781
        %v813 = vpack.c.b16 %v784, %v783
        %v814 = vpack.c.b16 %v786, %v785
        %v815 = vpack.c.b16 %v788, %v787
        %v816 = vpack.c.b16 %v790, %v789
        %v817 = vpack.c.b16 %v792, %v791
        %v818 = vpack.c.b16 %v794, %v793
        %843 = vmatpush.bf16.msra.mxu0 %v802
        %844 = vmatpush.bf16.msra.mxu0 %v801
        %845 = vmatpush.bf16.msra.mxu0 %v800
        %846 = vmatpush.bf16.msra.mxu0 %v799
        %847 = vmatpush.bf16.msra.mxu0 %v798
        %848 = vmatpush.bf16.msra.mxu0 %v797
        %849 = vmatpush.bf16.msra.mxu0 %v796
        %850 = vmatpush.bf16.msra.mxu0 %v795
        %851 = vmatmul.bf16.gmra.mxu0 %v603
        %v852 = vpop.f32.mrf.mxu0
        %v853 = vadd.f32 0.0, %v852
        %v854 = vpop.f32.mrf.mxu0
        %v855 = vadd.f32 0.0, %v854
        %856 = vmatmul.bf16.gmra.mxu0 %v606
        %v857 = vpop.f32.mrf.mxu0
        %v858 = vadd.f32 0.0, %v857
        %v859 = vpop.f32.mrf.mxu0
        %v860 = vadd.f32 0.0, %v859
        %861 = vmatmul.bf16.gmra.mxu0 %v609
        %v862 = vpop.f32.mrf.mxu0
        %v863 = vadd.f32 0.0, %v862
        %v864 = vpop.f32.mrf.mxu0
        %v865 = vadd.f32 0.0, %v864
        %866 = vmatmul.bf16.gmra.mxu0 %v612
        %v867 = vpop.f32.mrf.mxu0
        %v868 = vadd.f32 0.0, %v867
        %v869 = vpop.f32.mrf.mxu0
        %v870 = vadd.f32 0.0, %v869
        %871 = vmatmul.bf16.gmra.mxu0 %v615
        %v872 = vpop.f32.mrf.mxu0
        %v873 = vadd.f32 0.0, %v872
        %v874 = vpop.f32.mrf.mxu0
        %v875 = vadd.f32 0.0, %v874
        %876 = vmatmul.bf16.gmra.mxu0 %v618
        %v877 = vpop.f32.mrf.mxu0
        %v878 = vadd.f32 0.0, %v877
        %v879 = vpop.f32.mrf.mxu0
        %v880 = vadd.f32 0.0, %v879
        %881 = vmatmul.bf16.gmra.mxu0 %v621
        %v882 = vpop.f32.mrf.mxu0
        %v883 = vadd.f32 0.0, %v882
        %v884 = vpop.f32.mrf.mxu0
        %v885 = vadd.f32 0.0, %v884
        %886 = vmatmul.bf16.gmra.mxu0 %v624
        %v887 = vpop.f32.mrf.mxu0
        %v888 = vadd.f32 0.0, %v887
        %v889 = vpop.f32.mrf.mxu0
        %v890 = vadd.f32 0.0, %v889
        %891 = vmatmul.bf16.gmra.mxu0 %v627
        %v892 = vpop.f32.mrf.mxu0
        %v893 = vadd.f32 0.0, %v892
        %v894 = vpop.f32.mrf.mxu0
        %v895 = vadd.f32 0.0, %v894
        %896 = vmatmul.bf16.gmra.mxu0 %v630
        %v897 = vpop.f32.mrf.mxu0
        %v898 = vadd.f32 0.0, %v897
        %v899 = vpop.f32.mrf.mxu0
        %v900 = vadd.f32 0.0, %v899
        %901 = vmatmul.bf16.gmra.mxu0 %v633
        %v902 = vpop.f32.mrf.mxu0
        %v903 = vadd.f32 0.0, %v902
        %v904 = vpop.f32.mrf.mxu0
        %v905 = vadd.f32 0.0, %v904
        %906 = vmatmul.bf16.gmra.mxu0 %v636
        %v907 = vpop.f32.mrf.mxu0
        %v908 = vadd.f32 0.0, %v907
        %v909 = vpop.f32.mrf.mxu0
        %v910 = vadd.f32 0.0, %v909
        %911 = vmatmul.bf16.gmra.mxu0 %v639
        %v912 = vpop.f32.mrf.mxu0
        %v913 = vadd.f32 0.0, %v912
        %v914 = vpop.f32.mrf.mxu0
        %v915 = vadd.f32 0.0, %v914
        %916 = vmatmul.bf16.gmra.mxu0 %v642
        %v917 = vpop.f32.mrf.mxu0
        %v918 = vadd.f32 0.0, %v917
        %v919 = vpop.f32.mrf.mxu0
        %v920 = vadd.f32 0.0, %v919
        %921 = vmatmul.bf16.gmra.mxu0 %v645
        %v922 = vpop.f32.mrf.mxu0
        %v923 = vadd.f32 0.0, %v922
        %v924 = vpop.f32.mrf.mxu0
        %v925 = vadd.f32 0.0, %v924
        %926 = vmatmul.bf16.gmra.mxu0 %v648
        %v927 = vpop.f32.mrf.mxu0
        %v928 = vadd.f32 0.0, %v927
        %v929 = vpop.f32.mrf.mxu0
        %v930 = vadd.f32 0.0, %v929
        %931 = vdwg.mxu0
        %932 = vmatpush.bf16.msra.mxu0 %v810
        %933 = vmatpush.bf16.msra.mxu0 %v809
        %934 = vmatpush.bf16.msra.mxu0 %v808
        %935 = vmatpush.bf16.msra.mxu0 %v807
        %936 = vmatpush.bf16.msra.mxu0 %v806
        %937 = vmatpush.bf16.msra.mxu0 %v805
        %938 = vmatpush.bf16.msra.mxu0 %v804
        %939 = vmatpush.bf16.msra.mxu0 %v803
        %940 = vmatmul.bf16.gmra.mxu0 %v604
        %v941 = vpop.f32.mrf.mxu0
        %v942 = vadd.f32 %v853, %v941
        %v943 = vpop.f32.mrf.mxu0
        %v944 = vadd.f32 %v855, %v943
        %945 = vmatmul.bf16.gmra.mxu0 %v607
        %v946 = vpop.f32.mrf.mxu0
        %v947 = vadd.f32 %v858, %v946
        %v948 = vpop.f32.mrf.mxu0
        %v949 = vadd.f32 %v860, %v948
        %950 = vmatmul.bf16.gmra.mxu0 %v610
        %v951 = vpop.f32.mrf.mxu0
        %v952 = vadd.f32 %v863, %v951
        %v953 = vpop.f32.mrf.mxu0
        %v954 = vadd.f32 %v865, %v953
        %955 = vmatmul.bf16.gmra.mxu0 %v613
        %v956 = vpop.f32.mrf.mxu0
        %v957 = vadd.f32 %v868, %v956
        %v958 = vpop.f32.mrf.mxu0
        %v959 = vadd.f32 %v870, %v958
        %960 = vmatmul.bf16.gmra.mxu0 %v616
        %v961 = vpop.f32.mrf.mxu0
        %v962 = vadd.f32 %v873, %v961
        %v963 = vpop.f32.mrf.mxu0
        %v964 = vadd.f32 %v875, %v963
        %965 = vmatmul.bf16.gmra.mxu0 %v619
        %v966 = vpop.f32.mrf.mxu0
        %v967 = vadd.f32 %v878, %v966
        %v968 = vpop.f32.mrf.mxu0
        %v969 = vadd.f32 %v880, %v968
        %970 = vmatmul.bf16.gmra.mxu0 %v622
        %v971 = vpop.f32.mrf.mxu0
        %v972 = vadd.f32 %v883, %v971
        %v973 = vpop.f32.mrf.mxu0
        %v974 = vadd.f32 %v885, %v973
        %975 = vmatmul.bf16.gmra.mxu0 %v625
        %v976 = vpop.f32.mrf.mxu0
        %v977 = vadd.f32 %v888, %v976
        %v978 = vpop.f32.mrf.mxu0
        %v979 = vadd.f32 %v890, %v978
        %980 = vmatmul.bf16.gmra.mxu0 %v628
        %v981 = vpop.f32.mrf.mxu0
        %v982 = vadd.f32 %v893, %v981
        %v983 = vpop.f32.mrf.mxu0
        %v984 = vadd.f32 %v895, %v983
        %985 = vmatmul.bf16.gmra.mxu0 %v631
        %v986 = vpop.f32.mrf.mxu0
        %v987 = vadd.f32 %v898, %v986
        %v988 = vpop.f32.mrf.mxu0
        %v989 = vadd.f32 %v900, %v988
        %990 = vmatmul.bf16.gmra.mxu0 %v634
        %v991 = vpop.f32.mrf.mxu0
        %v992 = vadd.f32 %v903, %v991
        %v993 = vpop.f32.mrf.mxu0
        %v994 = vadd.f32 %v905, %v993
        %995 = vmatmul.bf16.gmra.mxu0 %v637
        %v996 = vpop.f32.mrf.mxu0
        %v997 = vadd.f32 %v908, %v996
        %v998 = vpop.f32.mrf.mxu0
        %v999 = vadd.f32 %v910, %v998
        %1000 = vmatmul.bf16.gmra.mxu0 %v640
        %v1001 = vpop.f32.mrf.mxu0
        %v1002 = vadd.f32 %v913, %v1001
        %v1003 = vpop.f32.mrf.mxu0
        %v1004 = vadd.f32 %v915, %v1003
        %1005 = vmatmul.bf16.gmra.mxu0 %v643
        %v1006 = vpop.f32.mrf.mxu0
        %v1007 = vadd.f32 %v918, %v1006
        %v1008 = vpop.f32.mrf.mxu0
        %v1009 = vadd.f32 %v920, %v1008
        %1010 = vmatmul.bf16.gmra.mxu0 %v646
        %v1011 = vpop.f32.mrf.mxu0
        %v1012 = vadd.f32 %v923, %v1011
        %v1013 = vpop.f32.mrf.mxu0
        %v1014 = vadd.f32 %v925, %v1013
        %1015 = vmatmul.bf16.gmra.mxu0 %v649
        %v1016 = vpop.f32.mrf.mxu0
        %v1017 = vadd.f32 %v928, %v1016
        %v1018 = vpop.f32.mrf.mxu0
        %v1019 = vadd.f32 %v930, %v1018
        %1020 = vdwg.mxu0
        %1021 = vmatpush.bf16.msra.mxu0 %v818
        %1022 = vmatpush.bf16.msra.mxu0 %v817
        %1023 = vmatpush.bf16.msra.mxu0 %v816
        %1024 = vmatpush.bf16.msra.mxu0 %v815
        %1025 = vmatpush.bf16.msra.mxu0 %v814
        %1026 = vmatpush.bf16.msra.mxu0 %v813
        %1027 = vmatpush.bf16.msra.mxu0 %v812
        %1028 = vmatpush.bf16.msra.mxu0 %v811
        %1029 = vmatmul.bf16.gmra.mxu0 %v605
        %v1030 = vpop.f32.mrf.mxu0
        %v1031 = vadd.f32 %v942, %v1030
        %v1032 = vpop.f32.mrf.mxu0
        %v1033 = vadd.f32 %v944, %v1032
        %1034 = vmatmul.bf16.gmra.mxu0 %v608
        %v1035 = vpop.f32.mrf.mxu0
        %v1036 = vadd.f32 %v947, %v1035
        %v1037 = vpop.f32.mrf.mxu0
        %v1038 = vadd.f32 %v949, %v1037
        %1039 = vmatmul.bf16.gmra.mxu0 %v611
        %v1040 = vpop.f32.mrf.mxu0
        %v1041 = vadd.f32 %v952, %v1040
        %v1042 = vpop.f32.mrf.mxu0
        %v1043 = vadd.f32 %v954, %v1042
        %1044 = vmatmul.bf16.gmra.mxu0 %v614
        %v1045 = vpop.f32.mrf.mxu0
        %v1046 = vadd.f32 %v957, %v1045
        %v1047 = vpop.f32.mrf.mxu0
        %v1048 = vadd.f32 %v959, %v1047
        %1049 = vmatmul.bf16.gmra.mxu0 %v617
        %v1050 = vpop.f32.mrf.mxu0
        %v1051 = vadd.f32 %v962, %v1050
        %v1052 = vpop.f32.mrf.mxu0
        %v1053 = vadd.f32 %v964, %v1052
        %1054 = vmatmul.bf16.gmra.mxu0 %v620
        %v1055 = vpop.f32.mrf.mxu0
        %v1056 = vadd.f32 %v967, %v1055
        %v1057 = vpop.f32.mrf.mxu0
        %v1058 = vadd.f32 %v969, %v1057
        %1059 = vmatmul.bf16.gmra.mxu0 %v623
        %v1060 = vpop.f32.mrf.mxu0
        %v1061 = vadd.f32 %v972, %v1060
        %v1062 = vpop.f32.mrf.mxu0
        %v1063 = vadd.f32 %v974, %v1062
        %1064 = vmatmul.bf16.gmra.mxu0 %v626
        %v1065 = vpop.f32.mrf.mxu0
        %v1066 = vadd.f32 %v977, %v1065
        %v1067 = vpop.f32.mrf.mxu0
        %v1068 = vadd.f32 %v979, %v1067
        %1069 = vmatmul.bf16.gmra.mxu0 %v629
        %v1070 = vpop.f32.mrf.mxu0
        %v1071 = vadd.f32 %v982, %v1070
        %v1072 = vpop.f32.mrf.mxu0
        %v1073 = vadd.f32 %v984, %v1072
        %1074 = vmatmul.bf16.gmra.mxu0 %v632
        %v1075 = vpop.f32.mrf.mxu0
        %v1076 = vadd.f32 %v987, %v1075
        %v1077 = vpop.f32.mrf.mxu0
        %v1078 = vadd.f32 %v989, %v1077
        %1079 = vmatmul.bf16.gmra.mxu0 %v635
        %v1080 = vpop.f32.mrf.mxu0
        %v1081 = vadd.f32 %v992, %v1080
        %v1082 = vpop.f32.mrf.mxu0
        %v1083 = vadd.f32 %v994, %v1082
        %1084 = vmatmul.bf16.gmra.mxu0 %v638
        %v1085 = vpop.f32.mrf.mxu0
        %v1086 = vadd.f32 %v997, %v1085
        %v1087 = vpop.f32.mrf.mxu0
        %v1088 = vadd.f32 %v999, %v1087
        %1089 = vmatmul.bf16.gmra.mxu0 %v641
        %v1090 = vpop.f32.mrf.mxu0
        %v1091 = vadd.f32 %v1002, %v1090
        %v1092 = vpop.f32.mrf.mxu0
        %v1093 = vadd.f32 %v1004, %v1092
        %1094 = vmatmul.bf16.gmra.mxu0 %v644
        %v1095 = vpop.f32.mrf.mxu0
        %v1096 = vadd.f32 %v1007, %v1095
        %v1097 = vpop.f32.mrf.mxu0
        %v1098 = vadd.f32 %v1009, %v1097
        %1099 = vmatmul.bf16.gmra.mxu0 %v647
        %v1100 = vpop.f32.mrf.mxu0
        %v1101 = vadd.f32 %v1012, %v1100
        %v1102 = vpop.f32.mrf.mxu0
        %v1103 = vadd.f32 %v1014, %v1102
        %1104 = vmatmul.bf16.gmra.mxu0 %v650
        %v1105 = vpop.f32.mrf.mxu0
        %v1106 = vadd.f32 %v1017, %v1105
        %v1107 = vpop.f32.mrf.mxu0
        %v1108 = vadd.f32 %v1019, %v1107
        %1109 = vdwg.mxu0
        %v1110 = vadd.f32 %v299, %v1031
        %v1111 = vadd.f32 %v300, %v1033
        %v1112 = vadd.f32 %v301, %v1036
        %v1113 = vadd.f32 %v302, %v1038
        %v1114 = vadd.f32 %v303, %v1041
        %v1115 = vadd.f32 %v304, %v1043
        %v1116 = vadd.f32 %v305, %v1046
        %v1117 = vadd.f32 %v306, %v1048
        %v1118 = vadd.f32 %v307, %v1051
        %v1119 = vadd.f32 %v308, %v1053
        %v1120 = vadd.f32 %v309, %v1056
        %v1121 = vadd.f32 %v310, %v1058
        %v1122 = vadd.f32 %v311, %v1061
        %v1123 = vadd.f32 %v312, %v1063
        %v1124 = vadd.f32 %v313, %v1066
        %v1125 = vadd.f32 %v314, %v1068
        %v1126 = vadd.f32 %v315, %v1071
        %v1127 = vadd.f32 %v316, %v1073
        %v1128 = vadd.f32 %v317, %v1076
        %v1129 = vadd.f32 %v318, %v1078
        %v1130 = vadd.f32 %v319, %v1081
        %v1131 = vadd.f32 %v320, %v1083
        %v1132 = vadd.f32 %v321, %v1086
        %v1133 = vadd.f32 %v322, %v1088
        %v1134 = vadd.f32 %v323, %v1091
        %v1135 = vadd.f32 %v324, %v1093
        %v1136 = vadd.f32 %v325, %v1096
        %v1137 = vadd.f32 %v326, %v1098
        %v1138 = vadd.f32 %v327, %v1101
        %v1139 = vadd.f32 %v328, %v1103
        %v1140 = vadd.f32 %v329, %v1106
        %v1141 = vadd.f32 %v330, %v1108
        %1142 = vst [vmem:[#allocation2] sm:$0xff] %v1110
        %1143 = vst [vmem:[#allocation2 + $0x8] sm:$0xff] %v1111
        %1144 = vst [vmem:[#allocation2 + $0x10] sm:$0xff] %v1112
        %1145 = vst [vmem:[#allocation2 + $0x18] sm:$0xff] %v1113
        %1146 = vst [vmem:[#allocation2 + $0x20] sm:$0xff] %v1114
        %1147 = vst [vmem:[#allocation2 + $0x28] sm:$0xff] %v1115
        %1148 = vst [vmem:[#allocation2 + $0x30] sm:$0xff] %v1116
        %1149 = vst [vmem:[#allocation2 + $0x38] sm:$0xff] %v1117
        %1150 = vst [vmem:[#allocation2 + $0x40] sm:$0xff] %v1118
        %1151 = vst [vmem:[#allocation2 + $0x48] sm:$0xff] %v1119
        %1152 = vst [vmem:[#allocation2 + $0x50] sm:$0xff] %v1120
        %1153 = vst [vmem:[#allocation2 + $0x58] sm:$0xff] %v1121
        %1154 = vst [vmem:[#allocation2 + $0x60] sm:$0xff] %v1122
        %1155 = vst [vmem:[#allocation2 + $0x68] sm:$0xff] %v1123
        %1156 = vst [vmem:[#allocation2 + $0x70] sm:$0xff] %v1124
        %1157 = vst [vmem:[#allocation2 + $0x78] sm:$0xff] %v1125
        %1158 = vst [vmem:[#allocation2 + $0x80] sm:$0xff] %v1126
        %1159 = vst [vmem:[#allocation2 + $0x88] sm:$0xff] %v1127
        %1160 = vst [vmem:[#allocation2 + $0x90] sm:$0xff] %v1128
        %1161 = vst [vmem:[#allocation2 + $0x98] sm:$0xff] %v1129
        %1162 = vst [vmem:[#allocation2 + $0xa0] sm:$0xff] %v1130
        %1163 = vst [vmem:[#allocation2 + $0xa8] sm:$0xff] %v1131
        %1164 = vst [vmem:[#allocation2 + $0xb0] sm:$0xff] %v1132
        %1165 = vst [vmem:[#allocation2 + $0xb8] sm:$0xff] %v1133
        %1166 = vst [vmem:[#allocation2 + $0xc0] sm:$0xff] %v1134
        %1167 = vst [vmem:[#allocation2 + $0xc8] sm:$0xff] %v1135
        %1168 = vst [vmem:[#allocation2 + $0xd0] sm:$0xff] %v1136
        %1169 = vst [vmem:[#allocation2 + $0xd8] sm:$0xff] %v1137
        %1170 = vst [vmem:[#allocation2 + $0xe0] sm:$0xff] %v1138
        %1171 = vst [vmem:[#allocation2 + $0xe8] sm:$0xff] %v1139
        %1172 = vst [vmem:[#allocation2 + $0xf0] sm:$0xff] %v1140
        %1173 = vst [vmem:[#allocation2 + $0xf8] sm:$0xff] %v1141
        // Predicated region
        $region45: #{tpu_custom_call.1} parent=31 // pred_check
          %p1174 = pneg %p263
        $region46: #{tpu_custom_call.1} parent=31 // pred_check_branch
          %1176 = sbr.rel (%p1174) target = $region48
        $region47: #{tpu_custom_call.1} parent=31 // pred_region
          %v1177 = vld [vmem:[#allocation2] sm:$0xff]
          %v1178 = vld [vmem:[#allocation2 + $0x8] sm:$0xff]
          %v1179 = vld [vmem:[#allocation2 + $0x10] sm:$0xff]
          %v1180 = vld [vmem:[#allocation2 + $0x18] sm:$0xff]
          %v1181 = vld [vmem:[#allocation2 + $0x20] sm:$0xff]
          %v1182 = vld [vmem:[#allocation2 + $0x28] sm:$0xff]
          %v1183 = vld [vmem:[#allocation2 + $0x30] sm:$0xff]
          %v1184 = vld [vmem:[#allocation2 + $0x38] sm:$0xff]
          %v1185 = vld [vmem:[#allocation2 + $0x40] sm:$0xff]
          %v1186 = vld [vmem:[#allocation2 + $0x48] sm:$0xff]
          %v1187 = vld [vmem:[#allocation2 + $0x50] sm:$0xff]
          %v1188 = vld [vmem:[#allocation2 + $0x58] sm:$0xff]
          %v1189 = vld [vmem:[#allocation2 + $0x60] sm:$0xff]
          %v1190 = vld [vmem:[#allocation2 + $0x68] sm:$0xff]
          %v1191 = vld [vmem:[#allocation2 + $0x70] sm:$0xff]
          %v1192 = vld [vmem:[#allocation2 + $0x78] sm:$0xff]
          %v1193 = vld [vmem:[#allocation2 + $0x80] sm:$0xff]
          %v1194 = vld [vmem:[#allocation2 + $0x88] sm:$0xff]
          %v1195 = vld [vmem:[#allocation2 + $0x90] sm:$0xff]
          %v1196 = vld [vmem:[#allocation2 + $0x98] sm:$0xff]
          %v1197 = vld [vmem:[#allocation2 + $0xa0] sm:$0xff]
          %v1198 = vld [vmem:[#allocation2 + $0xa8] sm:$0xff]
          %v1199 = vld [vmem:[#allocation2 + $0xb0] sm:$0xff]
          %v1200 = vld [vmem:[#allocation2 + $0xb8] sm:$0xff]
          %v1201 = vld [vmem:[#allocation2 + $0xc0] sm:$0xff]
          %v1202 = vld [vmem:[#allocation2 + $0xc8] sm:$0xff]
          %v1203 = vld [vmem:[#allocation2 + $0xd0] sm:$0xff]
          %v1204 = vld [vmem:[#allocation2 + $0xd8] sm:$0xff]
          %v1205 = vld [vmem:[#allocation2 + $0xe0] sm:$0xff]
          %v1206 = vld [vmem:[#allocation2 + $0xe8] sm:$0xff]
          %v1207 = vld [vmem:[#allocation2 + $0xf0] sm:$0xff]
          %v1208 = vld [vmem:[#allocation2 + $0xf8] sm:$0xff]
          %v1209 = vld [vmem:[%s261] sm:$0x1]
          %v1211 = vperm.slane %v1209, 0
          %v1213 = vadd.f32 %v1177, %v1211
          %v1214 = vadd.f32 %v1178, %v1211
          %v1215 = vadd.f32 %v1179, %v1211
          %v1216 = vadd.f32 %v1180, %v1211
          %v1217 = vadd.f32 %v1181, %v1211
          %v1218 = vadd.f32 %v1182, %v1211
          %v1219 = vadd.f32 %v1183, %v1211
          %v1220 = vadd.f32 %v1184, %v1211
          %v1221 = vadd.f32 %v1185, %v1211
          %v1222 = vadd.f32 %v1186, %v1211
          %v1223 = vadd.f32 %v1187, %v1211
          %v1224 = vadd.f32 %v1188, %v1211
          %v1225 = vadd.f32 %v1189, %v1211
          %v1226 = vadd.f32 %v1190, %v1211
          %v1227 = vadd.f32 %v1191, %v1211
          %v1228 = vadd.f32 %v1192, %v1211
          %v1229 = vadd.f32 %v1193, %v1211
          %v1230 = vadd.f32 %v1194, %v1211
          %v1231 = vadd.f32 %v1195, %v1211
          %v1232 = vadd.f32 %v1196, %v1211
          %v1233 = vadd.f32 %v1197, %v1211
          %v1234 = vadd.f32 %v1198, %v1211
          %v1235 = vadd.f32 %v1199, %v1211
          %v1236 = vadd.f32 %v1200, %v1211
          %v1237 = vadd.f32 %v1201, %v1211
          %v1238 = vadd.f32 %v1202, %v1211
          %v1239 = vadd.f32 %v1203, %v1211
          %v1240 = vadd.f32 %v1204, %v1211
          %v1241 = vadd.f32 %v1205, %v1211
          %v1242 = vadd.f32 %v1206, %v1211
          %v1243 = vadd.f32 %v1207, %v1211
          %v1244 = vadd.f32 %v1208, %v1211
          %1245 = vst [vmem:[%s255] sm:$0xff] %v1213
          %1246 = vst [vmem:[%s255 + $0x8] sm:$0xff] %v1214
          %1247 = vst [vmem:[%s255 + $0x10] sm:$0xff] %v1215
          %1248 = vst [vmem:[%s255 + $0x18] sm:$0xff] %v1216
          %1249 = vst [vmem:[%s255 + $0x20] sm:$0xff] %v1217
          %1250 = vst [vmem:[%s255 + $0x28] sm:$0xff] %v1218
          %1251 = vst [vmem:[%s255 + $0x30] sm:$0xff] %v1219
          %1252 = vst [vmem:[%s255 + $0x38] sm:$0xff] %v1220
          %1253 = vst [vmem:[%s255 + $0x40] sm:$0xff] %v1221
          %1254 = vst [vmem:[%s255 + $0x48] sm:$0xff] %v1222
          %1255 = vst [vmem:[%s255 + $0x50] sm:$0xff] %v1223
          %1256 = vst [vmem:[%s255 + $0x58] sm:$0xff] %v1224
          %1257 = vst [vmem:[%s255 + $0x60] sm:$0xff] %v1225
          %1258 = vst [vmem:[%s255 + $0x68] sm:$0xff] %v1226
          %1259 = vst [vmem:[%s255 + $0x70] sm:$0xff] %v1227
          %1260 = vst [vmem:[%s255 + $0x78] sm:$0xff] %v1228
          %1261 = vst [vmem:[%s255 + $0x80] sm:$0xff] %v1229
          %1262 = vst [vmem:[%s255 + $0x88] sm:$0xff] %v1230
          %1263 = vst [vmem:[%s255 + $0x90] sm:$0xff] %v1231
          %1264 = vst [vmem:[%s255 + $0x98] sm:$0xff] %v1232
          %1265 = vst [vmem:[%s255 + $0xa0] sm:$0xff] %v1233
          %1266 = vst [vmem:[%s255 + $0xa8] sm:$0xff] %v1234
          %1267 = vst [vmem:[%s255 + $0xb0] sm:$0xff] %v1235
          %1268 = vst [vmem:[%s255 + $0xb8] sm:$0xff] %v1236
          %1269 = vst [vmem:[%s255 + $0xc0] sm:$0xff] %v1237
          %1270 = vst [vmem:[%s255 + $0xc8] sm:$0xff] %v1238
          %1271 = vst [vmem:[%s255 + $0xd0] sm:$0xff] %v1239
          %1272 = vst [vmem:[%s255 + $0xd8] sm:$0xff] %v1240
          %1273 = vst [vmem:[%s255 + $0xe0] sm:$0xff] %v1241
          %1274 = vst [vmem:[%s255 + $0xe8] sm:$0xff] %v1242
          %1275 = vst [vmem:[%s255 + $0xf0] sm:$0xff] %v1243
          %1276 = vst [vmem:[%s255 + $0xf8] sm:$0xff] %v1244
        $region48: #{tpu_custom_call.1} parent=31 // pred_fallthru
          _
        %s1277 = sand.u32 %s132, 1
        %s1278 = scalar_lea.sflag [#allocation5], %s1277
        %s1279 = sand.u32 %s132, 1
        %s1280 = smul.addr %s1279, 256
        %s1281 = scalar_lea.vmem [#allocation8], %s1280
        // Predicated region
        $region49: #{tpu_custom_call.1} parent=31 // pred_check
          %p1282 = pneg %p142
        $region50: #{tpu_custom_call.1} parent=31 // pred_check_branch
          %1284 = sbr.rel (%p1282) target = $region52
        $region51: #{tpu_custom_call.1} parent=31 // pred_region
          %s1285 = smul.u32 32, %s26
          %1287 = vsyncadd %s1278, 0
          %s1288 = sadd.s32 %s27, %s1285
          %s1289 = smul.addr %s1288, 8
          %s1290 = scalar_lea.hbm %s3, %s1289
          %s1291 = sshll.u32 %s1281, 4
          %s1292 = int_to_ptr.vmem [resolvable:$true] %s1291
          %s1293 = sshll.u32 %s1290, 4
          %s1294 = int_to_ptr.hbm [resolvable:$true] %s1293
          %1299 = dma.vmem_to_hbm [thread:$0]  %s1292, 4096, %s1294, %s1278, 128, 128, 8
        $region52: #{tpu_custom_call.1} parent=31 // pred_fallthru
          _
      $region32: #{tpu_custom_call.1} parent=5 // pred_fallthru
        _
      %p1300 = scmp.le.s32.totalorder 2, %s16
      // Predicated region
      $region53: #{tpu_custom_call.1} parent=5 // pred_check
        %p1301 = pneg %p1300
      $region54: #{tpu_custom_call.1} parent=5 // pred_check_branch
        %1303 = sbr.rel (%p1301) target = $region56
      $region55: #{tpu_custom_call.1} parent=5 // pred_region
        %s1304 = ssub.s32 %s16, 2
        // Predicated region
        $region57: #{tpu_custom_call.1} parent=55 // pred_check
          %p1305 = pneg %p148
        $region58: #{tpu_custom_call.1} parent=55 // pred_check_branch
          %1307 = sbr.rel (%p1305) target = $region60
        $region59: #{tpu_custom_call.1} parent=55 // pred_region
          %s1308 = sand.u32 %s133, 1
          %s1309 = scalar_lea.sflag [#allocation5], %s1308
          %s1310 = sand.u32 %s133, 1
          %s1311 = smul.addr %s1310, 256
          %s1312 = scalar_lea.vmem [#allocation8], %s1311
          %1314 = dma.done %s1309, 4096
        $region60: #{tpu_custom_call.1} parent=55 // pred_fallthru
          _
      $region56: #{tpu_custom_call.1} parent=5 // pred_fallthru
        _
    $region6: #{tpu_custom_call.1} parent=1 // loop_footer
      %s20 = sadd.s32 1, %s16
    $region7: #{tpu_custom_call.1} parent=1 // loop_footer_branch
      %15 = sbr.rel target = $region3
    $region8: #{tpu_custom_call.1} parent=1 // loop_exit
      _
    %1315 = vsyncpa [#allocation4], 1
    %s1316 = scalar_lea.sflag [#allocation4], 1
    %1317 = vsyncpa %s1316, 1
    %1318 = vsyncpa [#allocation7], 1
    %1319 = vsyncpa [#allocation5], 1
    %s1320 = scalar_lea.sflag [#allocation5], 1
    %1321 = vsyncpa %s1320, 1

</llo_original>
